<compile_context>
chip_gen: v6e
topology: v6e:2x2x1
jax: 0.10.0
libtpu: 0.0.40
codegen_flags: <defaults>
</compile_context>

<pallas_src>
import jax
import jax.numpy as jnp
from jax.experimental import pallas as pl
from jax.experimental.pallas import tpu as pltpu


def _round_up(a: int, b: int) -> int:
    return (a + b - 1) // b * b


def _cos_sim_kernel(x_ref, et_ref, o_ref):
    """One (TN, TM) tile of the pairwise cosine-similarity matrix.

    x_ref : (TN, D)  raw (un-normalized) input rows
    et_ref: (D, TM)  pre-normalized embed, already transposed (lane-dense RHS)
    o_ref : (TN, TM) clip(<x_n, e_m>, -1, 1) in float32
    """
    x = x_ref[...].astype(jnp.float32)
    # F.normalize: x / max(||x||, eps)  ==  x * rsqrt(max(||x||^2, eps^2))
    ss = jnp.sum(x * x, axis=1, keepdims=True)
    xn = x * jax.lax.rsqrt(jnp.maximum(ss, jnp.float32(1e-24)))
    et = et_ref[...]
    dot = jnp.dot(xn.astype(et.dtype), et, preferred_element_type=jnp.float32)
    # Clamp so the wrapper's sqrt/arcsin can never see values outside [-1, 1].
    o_ref[...] = jnp.clip(dot, -1.0, 1.0)


def pairwise_cos_sim(x, en_t, *, tn=256, tm=512):
    """Cosine similarity between rows of x (N, D) and unit columns of en_t (D, M)."""
    n, d = x.shape
    d2, m = en_t.shape
    assert d == d2, "feature dims must match"

    tn_eff = min(tn, _round_up(n, 8))        # sublane-aligned row tile
    tm_eff = min(tm, _round_up(m, 128))      # lane-dense output tile (multiple of 128)
    n_pad = _round_up(n, tn_eff)
    m_pad = _round_up(m, tm_eff)

    x_p = jnp.pad(x, ((0, n_pad - n), (0, 0))) if n_pad != n else x
    e_p = jnp.pad(en_t, ((0, 0), (0, m_pad - m))) if m_pad != m else en_t

    grid = (n_pad // tn_eff, m_pad // tm_eff)
    out = pl.pallas_call(
        _cos_sim_kernel,
        out_shape=jax.ShapeDtypeStruct((n_pad, m_pad), jnp.float32),
        grid=grid,
        in_specs=[
            pl.BlockSpec((tn_eff, d), lambda i, j: (i, 0)),
            pl.BlockSpec((d, tm_eff), lambda i, j: (0, j)),
        ],
        out_specs=pl.BlockSpec((tn_eff, tm_eff), lambda i, j: (i, j)),
        compiler_params=pltpu.CompilerParams(
            dimension_semantics=("parallel", "parallel"),
            vmem_limit_bytes=48 * 1024 * 1024,   # headroom on v7x's 64 MiB VMEM
        ),
    )(x_p, e_p)
    return out[:n, :m]


def prompt_forward(x, embed, weight, *, tn=256, tm=512, mxu_dtype=jnp.bfloat16):
    """JAX/Pallas equivalent of Prompt.forward (forward value only)."""
    eps = jnp.float32(1e-12)
    # Pre-normalize the (constant) embed once and hand it to the kernel transposed.
    e32 = embed.astype(jnp.float32)
    e_ss = jnp.sum(e32 * e32, axis=1, keepdims=True)
    en = e32 * jax.lax.rsqrt(jnp.maximum(e_ss, eps * eps))
    en_t = en.T.astype(mxu_dtype)                         # (D, M)

    dot = pairwise_cos_sim(x, en_t, tn=tn, tm=tm)         # (N, M) in [-1, 1]
    # half_chord = ||xn - en|| / 2 = sqrt((1 - dot) / 2)
    half_chord_sq = jnp.clip(0.5 * (1.0 - dot), 0.0, 1.0)
    dists = 2.0 * jnp.arcsin(jnp.sqrt(half_chord_sq)) ** 2
    dists = dists * jnp.sign(weight)
    return jnp.abs(weight) * jnp.mean(dists)


def prompt_reference(x, embed, weight):
    """Pure-JAX reference matching the PyTorch module literally."""
    eps = 1e-12
    xn = x / jnp.maximum(jnp.linalg.norm(x, axis=1, keepdims=True), eps)
    en = embed / jnp.maximum(jnp.linalg.norm(embed, axis=1, keepdims=True), eps)
    diff = xn[:, None, :] - en[None, :, :]                # (N, M, D)
    d = jnp.linalg.norm(diff, axis=2)
    dists = 2.0 * jnp.arcsin(d / 2.0) ** 2
    dists = dists * jnp.sign(weight)
    return jnp.abs(weight) * jnp.mean(dists)


if __name__ == "__main__":
    key = jax.random.PRNGKey(0)
    k_x, k_e = jax.random.split(key)

    N, M, D = 16, 4, 256                   # N cutouts, M prompt embeds, feature dim D
    x = jax.random.normal(k_x, (N, D), dtype=jnp.float32)
    embed = jax.random.normal(k_e, (M, D), dtype=jnp.float32)
    weight = jnp.float32(1.0)              # Prompt(weight=1.0); stop=-inf is backward-only

    # f32 MXU path (validation) and bf16 MXU path (default / production).
    out_f32 = jax.block_until_ready(
        prompt_forward(x, embed, weight, mxu_dtype=jnp.float32))
    out_bf16 = jax.block_until_ready(prompt_forward(x, embed, weight))

    ref = prompt_reference(x, embed, weight)
    assert out_f32.shape == () and out_f32.dtype == jnp.float32
    assert out_bf16.shape == () and out_bf16.dtype == jnp.float32
    assert jnp.allclose(out_f32, ref, rtol=1e-4, atol=1e-4), (out_f32, ref)
    assert jnp.allclose(out_bf16, ref, rtol=5e-3, atol=5e-3), (out_bf16, ref)

    print("KERNEL_OK")
</pallas_src>

<mosaic_0001>
module attributes {stable_mosaic.version = 11 : i64} {
  func.func @_cos_sim_kernel(%arg0: i32, %arg1: i32, %arg2: memref<16x256xf32, #tpu.memory_space<vmem>>, %arg3: memref<256x128xf32, #tpu.memory_space<vmem>>, %arg4: memref<16x128xf32, #tpu.memory_space<vmem>>) attributes {dimension_semantics = [#tpu.dimension_semantics<parallel>, #tpu.dimension_semantics<parallel>], iteration_bounds = array<i64: 1, 1>, scalar_prefetch = 0 : i64, scratch_operands = 0 : i64, tpu.core_type = #tpu.core_type<tc>, window_params = [{transform_indices = @transform_0, window_bounds = array<i64: 16, 256>}, {transform_indices = @transform_1, window_bounds = array<i64: 256, 128>}, {transform_indices = @transform_2, window_bounds = array<i64: 16, 128>}]} {
    %c0 = arith.constant 0 : index
    %c0_0 = arith.constant 0 : index
    %0 = vector.load %arg2[%c0, %c0_0] : memref<16x256xf32, #tpu.memory_space<vmem>>, vector<16x256xf32>
    %1 = arith.mulf %0, %0 : vector<16x256xf32>
    %cst = arith.constant dense<0.000000e+00> : vector<16xf32>
    %2 = vector.multi_reduction <add>, %1, %cst [1] : vector<16x256xf32> to vector<16xf32>
    %3 = vector.shape_cast %2 : vector<16xf32> to vector<16x1xf32>
    %cst_1 = arith.constant 1.000000e-24 : f32
    %4 = vector.broadcast %cst_1 : f32 to vector<16x1xf32>
    %5 = arith.maximumf %3, %4 : vector<16x1xf32>
    %6 = math.rsqrt %5 : vector<16x1xf32>
    %7 = vector.broadcast %6 : vector<16x1xf32> to vector<16x256xf32>
    %8 = arith.mulf %0, %7 : vector<16x256xf32>
    %c0_2 = arith.constant 0 : index
    %c0_3 = arith.constant 0 : index
    %9 = vector.load %arg3[%c0_2, %c0_3] : memref<256x128xf32, #tpu.memory_space<vmem>>, vector<256x128xf32>
    %cst_4 = arith.constant dense<0.000000e+00> : vector<16x128xf32>
    %10 = tpu.matmul %8, %9, %cst_4 {dimension_numbers = #tpu.dot_dimension_numbers<[1], [0], [0], [1], [0, 0, 1, 1], [], []>} : vector<16x256xf32>, vector<256x128xf32>, vector<16x128xf32> -> vector<16x128xf32>
    %cst_5 = arith.constant -1.000000e+00 : f32
    %cst_6 = arith.constant 1.000000e+00 : f32
    %11 = vector.broadcast %cst_5 : f32 to vector<16x128xf32>
    %12 = arith.maximumf %11, %10 : vector<16x128xf32>
    %13 = vector.broadcast %cst_6 : f32 to vector<16x128xf32>
    %14 = arith.minimumf %13, %12 : vector<16x128xf32>
    %c0_7 = arith.constant 0 : index
    %c0_8 = arith.constant 0 : index
    %15 = vector.load %arg4[%c0_7, %c0_8] : memref<16x128xf32, #tpu.memory_space<vmem>>, vector<16x128xf32>
    tpu.vector_store %arg4[%c0_7, %c0_8], %14 {strides = array<i32>} : memref<16x128xf32, #tpu.memory_space<vmem>>, vector<16x128xf32>,
    return
  }
  func.func @transform_0(%arg0: i32, %arg1: i32) -> (i32, i32) {
    %c0_i32 = arith.constant 0 : i32
    %c0_i32_0 = arith.constant 0 : i32
    return %arg0, %c0_i32 : i32, i32
  }
  func.func @transform_1(%arg0: i32, %arg1: i32) -> (i32, i32) {
    %c0_i32 = arith.constant 0 : i32
    %c0_i32_0 = arith.constant 0 : i32
    return %c0_i32, %arg1 : i32, i32
  }
  func.func @transform_2(%arg0: i32, %arg1: i32) -> (i32, i32) {
    %c0_i32 = arith.constant 0 : i32
    return %arg0, %arg1 : i32, i32
  }
}

</mosaic_0001>

<llo_original>
// kernel: tpu_custom_call.1
$region0: #{tpu_custom_call.1}
  #allocation0 [shape = 'u32[]', space=smem, size = 0x4, offset = 0x4, fixed_abs, tag = 'smem constant byte address 0x4 - core index']
  #allocation1 [shape = 'u32[144,128]{1,0:T(1,128)}', space=vmem, size = 0x12000, scoped, tag = 'internal scratch']
  %s0 = inlined_call_operand.hbm [shape: f32[16,256], index: 0, kind: input, shape index: {}]
  %s1 = inlined_call_operand.hbm [shape: f32[256,128], index: 1, kind: input, shape index: {}]
  %s2 = inlined_call_operand.hbm [shape: f32[16,128], index: 2, kind: output, shape index: {}]
  %s3 = sld [smem:[#allocation0]]
  $region26: #{tpu_custom_call.1} parent=0
    _
  %s5 = ssub.s32 1, %s3
  %s6 = scalar_select 0, %s5, %s3
  $region1: #{tpu_custom_call.1} parent=0
    #allocation2 [shape = 'u8[16384]{0}', space=vmem, size = 0x4000, scoped, tag = 'input window, operand 0, single buffered']
    #allocation3 [shape = 's32[1]{0}', space=sflag, size = 0x4, scoped, tag = 'scoped memory for tpu_custom_call.1']
    #allocation4 [shape = 's32[1]{0}', space=sflag, size = 0x4, scoped, tag = 'scoped memory for tpu_custom_call.1']
    #allocation5 [shape = 'u8[131072]{0}', space=vmem, size = 0x20000, scoped, tag = 'input window, operand 1, single buffered']
    #allocation6 [shape = 's32[1]{0}', space=sflag, size = 0x4, scoped, tag = 'scoped memory for tpu_custom_call.1']
    #allocation7 [shape = 'u8[8192]{0}', space=vmem, size = 0x2000, scoped, tag = 'output window, operand 0, single buffered']
    %7 = vsyncpa [#allocation3], 0
    %8 = vsyncpa [#allocation6], 0
    %9 = vsyncpa [#allocation4], 0
    // Predicated region
    $region2: #{tpu_custom_call.1} parent=1 // pred_check
      _
    $region3: #{tpu_custom_call.1} parent=1 // pred_check_branch
      %11 = sbr.rel (0) target = $region5
    $region4: #{tpu_custom_call.1} parent=1 // pred_region
      %s13 = ssub.s32 512, 512
      %14 = vsyncadd [#allocation3], %s13
      %s15 = sshll.u32 [#allocation2], 4
      %s16 = int_to_ptr.vmem [resolvable:$true] %s15
      %21 = dma.hbm_to_vmem [thread:$0]  %s0, 512, %s16, [#allocation3], 256, 256, 16
    $region5: #{tpu_custom_call.1} parent=1 // pred_fallthru
      _
    // Predicated region
    $region6: #{tpu_custom_call.1} parent=1 // pred_check
      _
    $region7: #{tpu_custom_call.1} parent=1 // pred_check_branch
      %23 = sbr.rel (0) target = $region9
    $region8: #{tpu_custom_call.1} parent=1 // pred_region
      %s25 = ssub.s32 4096, 4096
      %26 = vsyncadd [#allocation6], %s25
      %s27 = sshll.u32 [#allocation5], 4
      %s28 = int_to_ptr.vmem [resolvable:$true] %s27
      %33 = dma.hbm_to_vmem [thread:$0]  %s1, 4096, %s28, [#allocation6], 128, 128, 8
    $region9: #{tpu_custom_call.1} parent=1 // pred_fallthru
      _
    // Predicated region
    $region10: #{tpu_custom_call.1} parent=1 // pred_check
      _
    $region11: #{tpu_custom_call.1} parent=1 // pred_check_branch
      %35 = sbr.rel (0) target = $region13
    $region12: #{tpu_custom_call.1} parent=1 // pred_region
      %36 = dma.done [#allocation3], 512
    $region13: #{tpu_custom_call.1} parent=1 // pred_fallthru
      _
    // Predicated region
    $region14: #{tpu_custom_call.1} parent=1 // pred_check
      _
    $region15: #{tpu_custom_call.1} parent=1 // pred_check_branch
      %38 = sbr.rel (0) target = $region17
    $region16: #{tpu_custom_call.1} parent=1 // pred_region
      %39 = dma.done [#allocation6], 4096
    $region17: #{tpu_custom_call.1} parent=1 // pred_fallthru
      _
    %v40 = vld [vmem:[#allocation2] sm:$0xff]
    %v41 = vld [vmem:[#allocation2 + $0x8] sm:$0xff]
    %v42 = vld [vmem:[#allocation2 + $0x10] sm:$0xff]
    %v43 = vld [vmem:[#allocation2 + $0x18] sm:$0xff]
    %v44 = vmul.f32 %v40, %v40
    %v45 = vmul.f32 %v41, %v41
    %v46 = vmul.f32 %v42, %v42
    %v47 = vmul.f32 %v43, %v43
    %v48 = vadd.f32 %v44, %v45
    %49 = vadd.xlane.f32.xlu0 %v48
    %v50 = vpop.xlane.xlu0 %49
    %v51 = vadd.f32 %v46, %v47
    %52 = vadd.xlane.f32.xlu0 %v51
    %v53 = vpop.xlane.xlu0 %52
    %v54 = vmax.f32 %v50, 1e-24
    %v55 = vmax.f32 %v53, 1e-24
    %v56 = vrsqrt.pop %v54
    %v57 = vrsqrt.pop %v55
    %v58 = vmul.f32 %v40, %v56
    %v59 = vmul.f32 %v41, %v56
    %v60 = vmul.f32 %v42, %v57
    %v61 = vmul.f32 %v43, %v57
    %v62 = vld [vmem:[#allocation5] sm:$0xff]
    %v63 = vld [vmem:[#allocation5 + $0x8] sm:$0xff]
    %v64 = vld [vmem:[#allocation5 + $0x10] sm:$0xff]
    %v65 = vld [vmem:[#allocation5 + $0x18] sm:$0xff]
    %v66 = vld [vmem:[#allocation5 + $0x20] sm:$0xff]
    %v67 = vld [vmem:[#allocation5 + $0x28] sm:$0xff]
    %v68 = vld [vmem:[#allocation5 + $0x30] sm:$0xff]
    %v69 = vld [vmem:[#allocation5 + $0x38] sm:$0xff]
    %v70 = vld [vmem:[#allocation5 + $0x40] sm:$0xff]
    %v71 = vld [vmem:[#allocation5 + $0x48] sm:$0xff]
    %v72 = vld [vmem:[#allocation5 + $0x50] sm:$0xff]
    %v73 = vld [vmem:[#allocation5 + $0x58] sm:$0xff]
    %v74 = vld [vmem:[#allocation5 + $0x60] sm:$0xff]
    %v75 = vld [vmem:[#allocation5 + $0x68] sm:$0xff]
    %v76 = vld [vmem:[#allocation5 + $0x70] sm:$0xff]
    %v77 = vld [vmem:[#allocation5 + $0x78] sm:$0xff]
    %v78 = vld [vmem:[#allocation5 + $0x80] sm:$0xff]
    %v79 = vld [vmem:[#allocation5 + $0x88] sm:$0xff]
    %v80 = vld [vmem:[#allocation5 + $0x90] sm:$0xff]
    %v81 = vld [vmem:[#allocation5 + $0x98] sm:$0xff]
    %v82 = vld [vmem:[#allocation5 + $0xa0] sm:$0xff]
    %v83 = vld [vmem:[#allocation5 + $0xa8] sm:$0xff]
    %v84 = vld [vmem:[#allocation5 + $0xb0] sm:$0xff]
    %v85 = vld [vmem:[#allocation5 + $0xb8] sm:$0xff]
    %v86 = vld [vmem:[#allocation5 + $0xc0] sm:$0xff]
    %v87 = vld [vmem:[#allocation5 + $0xc8] sm:$0xff]
    %v88 = vld [vmem:[#allocation5 + $0xd0] sm:$0xff]
    %v89 = vld [vmem:[#allocation5 + $0xd8] sm:$0xff]
    %v90 = vld [vmem:[#allocation5 + $0xe0] sm:$0xff]
    %v91 = vld [vmem:[#allocation5 + $0xe8] sm:$0xff]
    %v92 = vld [vmem:[#allocation5 + $0xf0] sm:$0xff]
    %v93 = vld [vmem:[#allocation5 + $0xf8] sm:$0xff]
    %94 = vmatprep.subr.mxu0 0.0
    %95 = vmatpush1.msra.mxu0 %v77
    %96 = vmatprep.subr.mxu0 0.0
    %97 = vmatpush1.msra.mxu0 %v76
    %98 = vmatprep.subr.mxu0 0.0
    %99 = vmatpush1.msra.mxu0 %v75
    %100 = vmatprep.subr.mxu0 0.0
    %101 = vmatpush1.msra.mxu0 %v74
    %102 = vmatprep.subr.mxu0 0.0
    %103 = vmatpush1.msra.mxu0 %v73
    %104 = vmatprep.subr.mxu0 0.0
    %105 = vmatpush1.msra.mxu0 %v72
    %106 = vmatprep.subr.mxu0 0.0
    %107 = vmatpush1.msra.mxu0 %v71
    %108 = vmatprep.subr.mxu0 0.0
    %109 = vmatpush1.msra.mxu0 %v70
    %110 = vmatprep.subr.mxu0 0.0
    %111 = vmatpush1.msra.mxu0 %v69
    %112 = vmatprep.subr.mxu0 0.0
    %113 = vmatpush1.msra.mxu0 %v68
    %114 = vmatprep.subr.mxu0 0.0
    %115 = vmatpush1.msra.mxu0 %v67
    %116 = vmatprep.subr.mxu0 0.0
    %117 = vmatpush1.msra.mxu0 %v66
    %118 = vmatprep.subr.mxu0 0.0
    %119 = vmatpush1.msra.mxu0 %v65
    %120 = vmatprep.subr.mxu0 0.0
    %121 = vmatpush1.msra.mxu0 %v64
    %122 = vmatprep.subr.mxu0 0.0
    %123 = vmatpush1.msra.mxu0 %v63
    %124 = vmatprep.subr.mxu0 0.0
    %125 = vmatpush1.msra.mxu0 %v62
    %126 = vmatprep.subr.mxu0 0.0
    %127 = vmatpush2.msra.mxu0 %v93
    %128 = vmatprep.subr.mxu0 0.0
    %129 = vmatpush2.msra.mxu0 %v92
    %130 = vmatprep.subr.mxu0 0.0
    %131 = vmatpush2.msra.mxu0 %v91
    %132 = vmatprep.subr.mxu0 0.0
    %133 = vmatpush2.msra.mxu0 %v90
    %134 = vmatprep.subr.mxu0 0.0
    %135 = vmatpush2.msra.mxu0 %v89
    %136 = vmatprep.subr.mxu0 0.0
    %137 = vmatpush2.msra.mxu0 %v88
    %138 = vmatprep.subr.mxu0 0.0
    %139 = vmatpush2.msra.mxu0 %v87
    %140 = vmatprep.subr.mxu0 0.0
    %141 = vmatpush2.msra.mxu0 %v86
    %142 = vmatprep.subr.mxu0 0.0
    %143 = vmatpush2.msra.mxu0 %v85
    %144 = vmatprep.subr.mxu0 0.0
    %145 = vmatpush2.msra.mxu0 %v84
    %146 = vmatprep.subr.mxu0 0.0
    %147 = vmatpush2.msra.mxu0 %v83
    %148 = vmatprep.subr.mxu0 0.0
    %149 = vmatpush2.msra.mxu0 %v82
    %150 = vmatprep.subr.mxu0 0.0
    %151 = vmatpush2.msra.mxu0 %v81
    %152 = vmatprep.subr.mxu0 0.0
    %153 = vmatpush2.msra.mxu0 %v80
    %154 = vmatprep.subr.mxu0 0.0
    %155 = vmatpush2.msra.mxu0 %v79
    %156 = vmatprep.subr.mxu0 0.0
    %157 = vmatpush2.msra.mxu0 %v78
    %158 = vmatprep.mubr.f32.mxu0 %v59
    %159 = vmatmul.mubr.f32.gmra.mxu0 %v58
    %v160 = vpop.f32.mrf.mxu0
    %v161 = vadd.f32 0.0, %v160
    %v162 = vpop.f32.mrf.mxu0
    %163 = vmatprep.mubr.f32.mxu0 %v61
    %164 = vmatmul.mubr.f32.gmra.mxu0 %v60
    %v165 = vpop.f32.mrf.mxu0
    %v166 = vadd.f32 0.0, %v165
    %v167 = vpop.f32.mrf.mxu0
    %168 = vdwg.mxu0
    %v169 = vmax.f32 %v161, -1.0
    %v170 = vmax.f32 %v166, -1.0
    %v171 = vmin.f32 %v169, 1.0
    %v172 = vmin.f32 %v170, 1.0
    %173 = vst [vmem:[#allocation7] sm:$0xff] %v171
    %174 = vst [vmem:[#allocation7 + $0x8] sm:$0xff] %v172
    // Predicated region
    $region18: #{tpu_custom_call.1} parent=1 // pred_check
      _
    $region19: #{tpu_custom_call.1} parent=1 // pred_check_branch
      %176 = sbr.rel (0) target = $region21
    $region20: #{tpu_custom_call.1} parent=1 // pred_region
      %s178 = ssub.s32 256, 256
      %179 = vsyncadd [#allocation4], %s178
      %s180 = sshll.u32 [#allocation7], 4
      %s181 = int_to_ptr.vmem [resolvable:$true] %s180
      %186 = dma.vmem_to_hbm [thread:$0]  %s181, 256, %s2, [#allocation4], 128, 128, 8
    $region21: #{tpu_custom_call.1} parent=1 // pred_fallthru
      _
    // Predicated region
    $region22: #{tpu_custom_call.1} parent=1 // pred_check
      _
    $region23: #{tpu_custom_call.1} parent=1 // pred_check_branch
      %188 = sbr.rel (0) target = $region25
    $region24: #{tpu_custom_call.1} parent=1 // pred_region
      %189 = dma.done [#allocation4], 256
    $region25: #{tpu_custom_call.1} parent=1 // pred_fallthru
      _
    %190 = vsyncpa [#allocation3], 1
    %191 = vsyncpa [#allocation6], 1
    %192 = vsyncpa [#allocation4], 1

</llo_original>
